<compile_context>
chip_gen: v6e
topology: v6e:2x2x1
jax: 0.10.0
libtpu: 0.0.40
codegen_flags: <defaults>
</compile_context>

<pallas_src>
import functools

import jax
import jax.numpy as jnp
from jax.experimental import pallas as pl
from jax.experimental.pallas import tpu as pltpu


def _pad3d_kernel(x_ref, o_ref, *, p):
    # x_ref: (B, D,      H,      W)
    # o_ref: (B, D+2p,   H+2p,   W+2p)
    b, d, h, w = x_ref.shape
    if p == 0:
        o_ref[...] = x_ref[...]
        return

    ho = h + 2 * p
    wo = w + 2 * p
    dt = o_ref.dtype

    # Zero only the border slabs (disjoint regions -> every output element is
    # stored exactly once; no double-write of the interior volume).
    o_ref[:, :p, :, :] = jnp.zeros((b, p, ho, wo), dt)          # front D planes
    o_ref[:, p + d:, :, :] = jnp.zeros((b, p, ho, wo), dt)      # back D planes
    o_ref[:, p:p + d, :p, :] = jnp.zeros((b, d, p, wo), dt)     # front H rows
    o_ref[:, p:p + d, p + h:, :] = jnp.zeros((b, d, p, wo), dt)  # back H rows
    o_ref[:, p:p + d, p:p + h, :p] = jnp.zeros((b, d, h, p), dt)      # left W cols
    o_ref[:, p:p + d, p:p + h, p + w:] = jnp.zeros((b, d, h, p), dt)  # right W cols

    # Interior: the actual data, written once.
    o_ref[:, p:p + d, p:p + h, p:p + w] = x_ref[...]


def _choose_batch(nc, in_bytes_per_vol, out_bytes_per_vol, budget_bytes):
    """Largest divisor B of nc whose double-buffered in+out blocks fit the
    VMEM budget; keep >= 2 grid steps (when nc >= 2) so v7x's two
    TensorCores both get work via the 'parallel' grid axis."""
    best = 1
    for b in range(1, nc + 1):
        if nc % b:
            continue
        if 2 * b * (in_bytes_per_vol + out_bytes_per_vol) > budget_bytes:
            continue
        if nc >= 2 and nc // b < 2:
            continue
        best = b
    return best


def custom_pad_layer_3d(x, kernel_size):
    """JAX/Pallas equivalent of CustomPadLayer3D(kernel_size)(x).

    x: (N, C, D, H, W) array. Returns (N, C, D+2p, H+2p, W+2p), p=(k-1)//2.
    """
    p = int((kernel_size - 1) / 2)
    n, c, d, h, w = x.shape
    if p == 0:
        return x

    do, ho, wo = d + 2 * p, h + 2 * p, w + 2 * p
    nc = n * c

    itemsize = jnp.dtype(x.dtype).itemsize
    in_vol = d * h * w * itemsize
    out_vol = do * ho * wo * itemsize

    # Conservative per-step VMEM budget (double-buffered in+out blocks):
    # safe on every generation (v7x has only 64 MiB physical VMEM).
    budget = 20 * 1024 * 1024

    if 2 * (in_vol + out_vol) > budget:
        # TODO(synk): split D across a second ("arbitrary") grid axis for
        # per-channel volumes too large for a single VMEM block; fall back to
        # XLA's fusible pad for now.
        return jnp.pad(x, ((0, 0), (0, 0), (p, p), (p, p), (p, p)),
                       mode="constant")

    B = _choose_batch(nc, in_vol, out_vol, budget)
    x_flat = x.reshape(nc, d, h, w)

    kernel = functools.partial(_pad3d_kernel, p=p)

    out_flat = pl.pallas_call(
        kernel,
        out_shape=jax.ShapeDtypeStruct((nc, do, ho, wo), x.dtype),
        grid_spec=pltpu.PrefetchScalarGridSpec(
            num_scalar_prefetch=0,
            grid=(nc // B,),
            in_specs=[
                pl.BlockSpec((B, d, h, w), lambda i: (i, 0, 0, 0)),
            ],
            out_specs=pl.BlockSpec((B, do, ho, wo), lambda i: (i, 0, 0, 0)),
        ),
        compiler_params=pltpu.CompilerParams(
            dimension_semantics=("parallel",),
            vmem_limit_bytes=32 * 1024 * 1024,
        ),
    )(x_flat)

    return out_flat.reshape(n, c, do, ho, wo)


if __name__ == "__main__":
    # Small, deterministic example consistent with a 5D conv-style input.
    key = jax.random.PRNGKey(0)
    N, C, D, H, W = 2, 4, 8, 8, 8
    kernel_size = 3  # -> pad of 1 on each side of D, H, W

    x = jax.random.normal(key, (N, C, D, H, W), dtype=jnp.float32)

    out = custom_pad_layer_3d(x, kernel_size)
    out = jax.block_until_ready(out)

    # Reference check against jnp.pad (same semantics as F.pad constant 0).
    p = (kernel_size - 1) // 2
    ref = jnp.pad(
        x, ((0, 0), (0, 0), (p, p), (p, p), (p, p)), mode="constant"
    )
    assert out.shape == (N, C, D + 2 * p, H + 2 * p, W + 2 * p), out.shape
    assert out.dtype == x.dtype
    assert jnp.allclose(out, ref), "mismatch vs reference pad"

    print("KERNEL_OK")
</pallas_src>

<mosaic_0001>
module attributes {stable_mosaic.version = 11 : i64} {
  func.func @_pad3d_kernel(%arg0: i32, %arg1: memref<4x8x8x8xf32, #tpu.memory_space<vmem>>, %arg2: memref<4x10x10x10xf32, #tpu.memory_space<vmem>>) attributes {dimension_semantics = [#tpu.dimension_semantics<parallel>], iteration_bounds = array<i64: 2>, scalar_prefetch = 0 : i64, scratch_operands = 0 : i64, tpu.core_type = #tpu.core_type<tc>, window_params = [{transform_indices = @transform_0, window_bounds = array<i64: 4, 8, 8, 8>}, {transform_indices = @transform_1, window_bounds = array<i64: 4, 10, 10, 10>}]} {
    %cst = arith.constant 0.000000e+00 : f32
    %0 = vector.broadcast %cst : f32 to vector<4x1x10x10xf32>
    %c0 = arith.constant 0 : index
    %c0_0 = arith.constant 0 : index
    %c0_1 = arith.constant 0 : index
    %c0_2 = arith.constant 0 : index
    %1 = vector.load %arg2[%c0, %c0_0, %c0_1, %c0_2] : memref<4x10x10x10xf32, #tpu.memory_space<vmem>>, vector<4x1x10x10xf32>
    tpu.vector_store %arg2[%c0, %c0_0, %c0_1, %c0_2], %0 {strides = array<i32>} : memref<4x10x10x10xf32, #tpu.memory_space<vmem>>, vector<4x1x10x10xf32>,
    %cst_3 = arith.constant 0.000000e+00 : f32
    %2 = vector.broadcast %cst_3 : f32 to vector<4x1x10x10xf32>
    %c0_4 = arith.constant 0 : index
    %c9 = arith.constant 9 : index
    %c0_5 = arith.constant 0 : index
    %c0_6 = arith.constant 0 : index
    %3 = vector.load %arg2[%c0_4, %c9, %c0_5, %c0_6] : memref<4x10x10x10xf32, #tpu.memory_space<vmem>>, vector<4x1x10x10xf32>
    tpu.vector_store %arg2[%c0_4, %c9, %c0_5, %c0_6], %2 {strides = array<i32>} : memref<4x10x10x10xf32, #tpu.memory_space<vmem>>, vector<4x1x10x10xf32>,
    %cst_7 = arith.constant 0.000000e+00 : f32
    %4 = vector.broadcast %cst_7 : f32 to vector<4x8x1x10xf32>
    %c0_8 = arith.constant 0 : index
    %c1 = arith.constant 1 : index
    %c0_9 = arith.constant 0 : index
    %c0_10 = arith.constant 0 : index
    %5 = vector.load %arg2[%c0_8, %c1, %c0_9, %c0_10] : memref<4x10x10x10xf32, #tpu.memory_space<vmem>>, vector<4x8x1x10xf32>
    tpu.vector_store %arg2[%c0_8, %c1, %c0_9, %c0_10], %4 {strides = array<i32>} : memref<4x10x10x10xf32, #tpu.memory_space<vmem>>, vector<4x8x1x10xf32>,
    %cst_11 = arith.constant 0.000000e+00 : f32
    %6 = vector.broadcast %cst_11 : f32 to vector<4x8x1x10xf32>
    %c0_12 = arith.constant 0 : index
    %c1_13 = arith.constant 1 : index
    %c9_14 = arith.constant 9 : index
    %c0_15 = arith.constant 0 : index
    %7 = vector.load %arg2[%c0_12, %c1_13, %c9_14, %c0_15] : memref<4x10x10x10xf32, #tpu.memory_space<vmem>>, vector<4x8x1x10xf32>
    tpu.vector_store %arg2[%c0_12, %c1_13, %c9_14, %c0_15], %6 {strides = array<i32>} : memref<4x10x10x10xf32, #tpu.memory_space<vmem>>, vector<4x8x1x10xf32>,
    %cst_16 = arith.constant 0.000000e+00 : f32
    %8 = vector.broadcast %cst_16 : f32 to vector<4x8x8x1xf32>
    %c0_17 = arith.constant 0 : index
    %c1_18 = arith.constant 1 : index
    %c1_19 = arith.constant 1 : index
    %c0_20 = arith.constant 0 : index
    %9 = vector.load %arg2[%c0_17, %c1_18, %c1_19, %c0_20] : memref<4x10x10x10xf32, #tpu.memory_space<vmem>>, vector<4x8x8x1xf32>
    tpu.vector_store %arg2[%c0_17, %c1_18, %c1_19, %c0_20], %8 {strides = array<i32>} : memref<4x10x10x10xf32, #tpu.memory_space<vmem>>, vector<4x8x8x1xf32>,
    %cst_21 = arith.constant 0.000000e+00 : f32
    %10 = vector.broadcast %cst_21 : f32 to vector<4x8x8x1xf32>
    %c0_22 = arith.constant 0 : index
    %c1_23 = arith.constant 1 : index
    %c1_24 = arith.constant 1 : index
    %c9_25 = arith.constant 9 : index
    %11 = vector.load %arg2[%c0_22, %c1_23, %c1_24, %c9_25] : memref<4x10x10x10xf32, #tpu.memory_space<vmem>>, vector<4x8x8x1xf32>
    tpu.vector_store %arg2[%c0_22, %c1_23, %c1_24, %c9_25], %10 {strides = array<i32>} : memref<4x10x10x10xf32, #tpu.memory_space<vmem>>, vector<4x8x8x1xf32>,
    %c0_26 = arith.constant 0 : index
    %c0_27 = arith.constant 0 : index
    %c0_28 = arith.constant 0 : index
    %c0_29 = arith.constant 0 : index
    %12 = vector.load %arg1[%c0_26, %c0_27, %c0_28, %c0_29] : memref<4x8x8x8xf32, #tpu.memory_space<vmem>>, vector<4x8x8x8xf32>
    %c0_30 = arith.constant 0 : index
    %c1_31 = arith.constant 1 : index
    %c1_32 = arith.constant 1 : index
    %c1_33 = arith.constant 1 : index
    %13 = vector.load %arg2[%c0_30, %c1_31, %c1_32, %c1_33] : memref<4x10x10x10xf32, #tpu.memory_space<vmem>>, vector<4x8x8x8xf32>
    tpu.vector_store %arg2[%c0_30, %c1_31, %c1_32, %c1_33], %12 {strides = array<i32>} : memref<4x10x10x10xf32, #tpu.memory_space<vmem>>, vector<4x8x8x8xf32>,
    return
  }
  func.func @transform_0(%arg0: i32) -> (i32, i32, i32, i32) {
    %c0_i32 = arith.constant 0 : i32
    %c0_i32_0 = arith.constant 0 : i32
    %c0_i32_1 = arith.constant 0 : i32
    %c0_i32_2 = arith.constant 0 : i32
    return %arg0, %c0_i32, %c0_i32_0, %c0_i32_1 : i32, i32, i32, i32
  }
  func.func @transform_1(%arg0: i32) -> (i32, i32, i32, i32) {
    %c0_i32 = arith.constant 0 : i32
    %c0_i32_0 = arith.constant 0 : i32
    %c0_i32_1 = arith.constant 0 : i32
    %c0_i32_2 = arith.constant 0 : i32
    return %arg0, %c0_i32, %c0_i32_0, %c0_i32_1 : i32, i32, i32, i32
  }
}

</mosaic_0001>

<llo_original>
// kernel: tpu_custom_call.1
$region0: #{tpu_custom_call.1}
  #allocation0 [shape = 'u32[]', space=smem, size = 0x4, offset = 0x4, fixed_abs, tag = 'smem constant byte address 0x4 - core index']
  #allocation1 [shape = 'u32[144,128]{1,0:T(1,128)}', space=vmem, size = 0x12000, scoped, tag = 'internal scratch']
  %s0 = inlined_call_operand.hbm [shape: f32[8,8,8,8], index: 0, kind: input, shape index: {}]
  %s1 = inlined_call_operand.vmem [shape: f32[8,10,10,10], index: 1, kind: output, shape index: {}]
  %s2 = sld [smem:[#allocation0]]
  $region41: #{tpu_custom_call.1} parent=0
    _
  %s4 = ssub.s32 1, %s2
  %s5 = scalar_select 0, %s4, %s2
  $region1: #{tpu_custom_call.1} parent=0
    #allocation2 [shape = 'u8[262144]{0}', space=vmem, size = 0x40000, scoped, tag = 'input window, operand 0']
    #allocation3 [shape = 's32[2]{0}', space=sflag, size = 0x8, scoped, tag = 'scoped memory for tpu_custom_call.1']
    %6 = vsyncpa [#allocation3], 0
    %s7 = scalar_lea.sflag [#allocation3], 1
    %8 = vsyncpa %s7, 0
    loop: start=0, step=1, limit=4
    $region2: #{tpu_custom_call.1} parent=1 // loop_pre_header
      _
    $region3: #{tpu_custom_call.1} parent=1 // loop_header
      %s10 = sphi 0, %s14
      %p11 = scmp.ge.s32.totalorder %s10, 4
      %s20 = sphi 0, %s22
      %s23 = sphi 0, %s20
      %s24 = sphi 0, %s23
      %s40 = sphi 0, %s24
      %s46 = sphi 0, %s48
      %s49 = sphi 0, %s46
      %s50 = sphi 0, %s49
      %s66 = sphi 0, %s50
    $region4: #{tpu_custom_call.1} parent=1 // loop_header_branch
      %13 = sbr.rel (%p11) target = $region8
    $region5: #{tpu_custom_call.1} parent=1 // loop_body
      %s15 = ssub.s32 %s10, 1
      %s16 = ssub.s32 %s10, 2
      %s17 = sadd.s32 %s10, 1
      %s18 = ssub.s32 %s10, %s17
      %p19 = scmp.eq.s32.totalorder %s18, 0
      %s21 = sadd.s32 %s20, 1
      %s22 = scalar_select %p19, %s20, %s21
      %p25 = pneg %p19
      %p26 = scmp.eq.s32.totalorder %s10, 1
      %p27 = por %p25, %p26
      %p28 = scmp.ne.s32.totalorder %s20, %s23
      %p29 = scmp.eq.s32.totalorder %s10, 0
      %p30 = por %p28, %p29
      %p31 = scmp.ne.s32.totalorder %s20, %s23
      %p32 = scmp.eq.s32.totalorder %s15, 1
      %p33 = por %p31, %p32
      %p34 = scmp.ne.s32.totalorder %s23, %s24
      %p35 = scmp.eq.s32.totalorder %s15, 0
      %p36 = por %p34, %p35
      %p37 = scmp.ne.s32.totalorder %s23, %s24
      %p38 = scmp.eq.s32.totalorder %s16, 1
      %p39 = por %p37, %p38
      %p41 = scmp.ne.s32.totalorder %s24, %s40
      %p42 = scmp.eq.s32.totalorder %s16, 0
      %p43 = por %p41, %p42
      %s44 = ssub.s32 %s10, %s17
      %p45 = scmp.eq.s32.totalorder %s44, 0
      %s47 = sadd.s32 %s46, 1
      %s48 = scalar_select %p45, %s46, %s47
      %p51 = pneg %p45
      %p52 = scmp.eq.s32.totalorder %s10, 1
      %p53 = por %p51, %p52
      %p54 = scmp.ne.s32.totalorder %s46, %s49
      %p55 = scmp.eq.s32.totalorder %s10, 0
      %p56 = por %p54, %p55
      %p57 = scmp.ne.s32.totalorder %s46, %s49
      %p58 = scmp.eq.s32.totalorder %s15, 1
      %p59 = por %p57, %p58
      %p60 = scmp.ne.s32.totalorder %s49, %s50
      %p61 = scmp.eq.s32.totalorder %s15, 0
      %p62 = por %p60, %p61
      %p63 = scmp.ne.s32.totalorder %s49, %s50
      %p64 = scmp.eq.s32.totalorder %s16, 1
      %p65 = por %p63, %p64
      %p67 = scmp.ne.s32.totalorder %s50, %s66
      %p68 = scmp.eq.s32.totalorder %s16, 0
      %p69 = por %p67, %p68
      %p70 = scmp.le.s32.totalorder 1, %s10
      %p71 = scmp.lt.s32.totalorder %s10, 3
      %p72 = pnand %p70, %p71
      %p73 = pneg %p72
      // Predicated region
      $region9: #{tpu_custom_call.1} parent=5 // pred_check
        _
      $region10: #{tpu_custom_call.1} parent=5 // pred_check_branch
        %75 = sbr.rel (%p72) target = $region12
      $region11: #{tpu_custom_call.1} parent=5 // pred_region
        %s76 = ssub.s32 %s10, 1
      $region12: #{tpu_custom_call.1} parent=5 // pred_fallthru
        _
      %p77 = scmp.lt.s32.totalorder %s10, 2
      // Predicated region
      $region13: #{tpu_custom_call.1} parent=5 // pred_check
        %p78 = pneg %p77
      $region14: #{tpu_custom_call.1} parent=5 // pred_check_branch
        %80 = sbr.rel (%p78) target = $region16
      $region15: #{tpu_custom_call.1} parent=5 // pred_region
        // Predicated region
        $region17: #{tpu_custom_call.1} parent=15 // pred_check
          %p81 = pneg %p30
        $region18: #{tpu_custom_call.1} parent=15 // pred_check_branch
          %83 = sbr.rel (%p81) target = $region20
        $region19: #{tpu_custom_call.1} parent=15 // pred_region
          %s84 = sand.u32 %s20, 1
          %s85 = scalar_lea.sflag [#allocation3], %s84
          %s86 = sand.u32 %s20, 1
          %s87 = smul.addr %s86, 256
          %s88 = scalar_lea.vmem [#allocation2], %s87
          %s89 = smul.u32 4, %s10
          %s91 = ssub.s32 4096, 4096
          %92 = vsyncadd %s85, %s91
          %s93 = smul.addr %s89, 8
          %s94 = smul.addr %s93, 128
          %s95 = scalar_lea.hbm %s0, %s94
          %s96 = sshll.u32 %s88, 4
          %s97 = int_to_ptr.vmem [resolvable:$true] %s96
          %102 = dma.hbm_to_vmem [thread:$0]  %s95, 4096, %s97, %s85, 128, 128, 8
        $region20: #{tpu_custom_call.1} parent=15 // pred_fallthru
          _
      $region16: #{tpu_custom_call.1} parent=5 // pred_fallthru
        _
      %p103 = scmp.le.s32.totalorder 1, %s10
      %p104 = scmp.lt.s32.totalorder %s10, 3
      %p105 = pnand %p103, %p104
      %p106 = pneg %p105
      // Predicated region
      $region21: #{tpu_custom_call.1} parent=5 // pred_check
        _
      $region22: #{tpu_custom_call.1} parent=5 // pred_check_branch
        %108 = sbr.rel (%p105) target = $region24
      $region23: #{tpu_custom_call.1} parent=5 // pred_region
        %s109 = ssub.s32 %s10, 1
        %s110 = sand.u32 %s23, 1
        %s111 = scalar_lea.sflag [#allocation3], %s110
        %s112 = sand.u32 %s23, 1
        %s113 = smul.addr %s112, 256
        %s114 = scalar_lea.vmem [#allocation2], %s113
        // Predicated region
        $region25: #{tpu_custom_call.1} parent=23 // pred_check
          %p115 = pneg %p36
        $region26: #{tpu_custom_call.1} parent=23 // pred_check_branch
          %117 = sbr.rel (%p115) target = $region28
        $region27: #{tpu_custom_call.1} parent=23 // pred_region
          %118 = dma.done %s111, 4096
        $region28: #{tpu_custom_call.1} parent=23 // pred_fallthru
          _
        %s119 = sand.u32 %s23, 1
        %s120 = scalar_lea.sflag [#allocation3], %s119
        %s121 = sand.u32 %s23, 1
        %s122 = smul.addr %s121, 256
        %s123 = scalar_lea.vmem [#allocation2], %s122
        %p124 = pneg %p36
        %p125 = pneg %p33
        %p126 = pneg %p62
        %p127 = pneg %p59
        %s128 = smul.u32 4, %s15
        %p129 = scmp.lt.s32.totalorder %s128, 7
        %s130 = scalar_select %p129, %s128, 7
        %s131 = smul.addr %s130, 20
        %s132 = smul.addr %s131, 8
        %s133 = scalar_lea.vmem %s1, %s132
        %s134 = smul.u32 4, %s15
        %s135 = smul.u32 4, %s15
        %p136 = scmp.lt.s32.totalorder %s135, 7
        %s137 = scalar_select %p136, %s135, 7
        %s138 = smul.addr %s137, 20
        %s139 = smul.addr %s138, 8
        %s140 = scalar_lea.vmem %s1, %s139
        %s141 = smul.u32 4, %s15
        %vm142 = vcmask 80896
        %143 = vst.msk [vmem:[%s140] sm:$0xff] %vm142, 0.0
        %vm144 = vcmask 74752
        %145 = vst.msk [vmem:[%s140 + $0x8] sm:$0x3] %vm144, 0.0
        %146 = vst.msk [vmem:[%s140 + $0xa0] sm:$0xff] %vm142, 0.0
        %147 = vst.msk [vmem:[%s140 + $0xa8] sm:$0x3] %vm144, 0.0
        %148 = vst.msk [vmem:[%s140 + $0x140] sm:$0xff] %vm142, 0.0
        %149 = vst.msk [vmem:[%s140 + $0x148] sm:$0x3] %vm144, 0.0
        %150 = vst.msk [vmem:[%s140 + $0x1e0] sm:$0xff] %vm142, 0.0
        %151 = vst.msk [vmem:[%s140 + $0x1e8] sm:$0x3] %vm144, 0.0
        %s152 = scalar_lea.vmem %s140, 144
        %153 = vst.msk [vmem:[%s152] sm:$0xff] %vm142, 0.0
        %154 = vst.msk [vmem:[%s152 + $0x8] sm:$0x3] %vm144, 0.0
        %155 = vst.msk [vmem:[%s152 + $0xa0] sm:$0xff] %vm142, 0.0
        %156 = vst.msk [vmem:[%s152 + $0xa8] sm:$0x3] %vm144, 0.0
        %157 = vst.msk [vmem:[%s152 + $0x140] sm:$0xff] %vm142, 0.0
        %158 = vst.msk [vmem:[%s152 + $0x148] sm:$0x3] %vm144, 0.0
        %159 = vst.msk [vmem:[%s152 + $0x1e0] sm:$0xff] %vm142, 0.0
        %160 = vst.msk [vmem:[%s152 + $0x1e8] sm:$0x3] %vm144, 0.0
        %s161 = scalar_lea.vmem %s140, 16
        %vm162 = vcmask 73728
        %163 = vst.msk [vmem:[%s161] sm:$0x1] %vm162, 0.0
        %164 = vst.msk [vmem:[%s161 + $0x10] sm:$0x1] %vm162, 0.0
        %165 = vst.msk [vmem:[%s161 + $0x20] sm:$0x1] %vm162, 0.0
        %166 = vst.msk [vmem:[%s161 + $0x30] sm:$0x1] %vm162, 0.0
        %167 = vst.msk [vmem:[%s161 + $0x40] sm:$0x1] %vm162, 0.0
        %168 = vst.msk [vmem:[%s161 + $0x50] sm:$0x1] %vm162, 0.0
        %169 = vst.msk [vmem:[%s161 + $0x60] sm:$0x1] %vm162, 0.0
        %170 = vst.msk [vmem:[%s161 + $0x70] sm:$0x1] %vm162, 0.0
        %171 = vst.msk [vmem:[%s161 + $0xa0] sm:$0x1] %vm162, 0.0
        %172 = vst.msk [vmem:[%s161 + $0xb0] sm:$0x1] %vm162, 0.0
        %173 = vst.msk [vmem:[%s161 + $0xc0] sm:$0x1] %vm162, 0.0
        %174 = vst.msk [vmem:[%s161 + $0xd0] sm:$0x1] %vm162, 0.0
        %175 = vst.msk [vmem:[%s161 + $0xe0] sm:$0x1] %vm162, 0.0
        %176 = vst.msk [vmem:[%s161 + $0xf0] sm:$0x1] %vm162, 0.0
        %177 = vst.msk [vmem:[%s161 + $0x100] sm:$0x1] %vm162, 0.0
        %178 = vst.msk [vmem:[%s161 + $0x110] sm:$0x1] %vm162, 0.0
        %179 = vst.msk [vmem:[%s161 + $0x140] sm:$0x1] %vm162, 0.0
        %180 = vst.msk [vmem:[%s161 + $0x150] sm:$0x1] %vm162, 0.0
        %181 = vst.msk [vmem:[%s161 + $0x160] sm:$0x1] %vm162, 0.0
        %182 = vst.msk [vmem:[%s161 + $0x170] sm:$0x1] %vm162, 0.0
        %183 = vst.msk [vmem:[%s161 + $0x180] sm:$0x1] %vm162, 0.0
        %184 = vst.msk [vmem:[%s161 + $0x190] sm:$0x1] %vm162, 0.0
        %185 = vst.msk [vmem:[%s161 + $0x1a0] sm:$0x1] %vm162, 0.0
        %186 = vst.msk [vmem:[%s161 + $0x1b0] sm:$0x1] %vm162, 0.0
        %187 = vst.msk [vmem:[%s161 + $0x1e0] sm:$0x1] %vm162, 0.0
        %188 = vst.msk [vmem:[%s161 + $0x1f0] sm:$0x1] %vm162, 0.0
        %189 = vst.msk [vmem:[%s161 + $0x200] sm:$0x1] %vm162, 0.0
        %190 = vst.msk [vmem:[%s161 + $0x210] sm:$0x1] %vm162, 0.0
        %191 = vst.msk [vmem:[%s161 + $0x220] sm:$0x1] %vm162, 0.0
        %192 = vst.msk [vmem:[%s161 + $0x230] sm:$0x1] %vm162, 0.0
        %193 = vst.msk [vmem:[%s161 + $0x240] sm:$0x1] %vm162, 0.0
        %194 = vst.msk [vmem:[%s161 + $0x250] sm:$0x1] %vm162, 0.0
        %195 = vst.msk [vmem:[%s161 + $0x9] sm:$0x1] %vm162, 0.0
        %196 = vst.msk [vmem:[%s161 + $0x19] sm:$0x1] %vm162, 0.0
        %197 = vst.msk [vmem:[%s161 + $0x29] sm:$0x1] %vm162, 0.0
        %198 = vst.msk [vmem:[%s161 + $0x39] sm:$0x1] %vm162, 0.0
        %199 = vst.msk [vmem:[%s161 + $0x49] sm:$0x1] %vm162, 0.0
        %200 = vst.msk [vmem:[%s161 + $0x59] sm:$0x1] %vm162, 0.0
        %201 = vst.msk [vmem:[%s161 + $0x69] sm:$0x1] %vm162, 0.0
        %202 = vst.msk [vmem:[%s161 + $0x79] sm:$0x1] %vm162, 0.0
        %203 = vst.msk [vmem:[%s161 + $0xa9] sm:$0x1] %vm162, 0.0
        %204 = vst.msk [vmem:[%s161 + $0xb9] sm:$0x1] %vm162, 0.0
        %205 = vst.msk [vmem:[%s161 + $0xc9] sm:$0x1] %vm162, 0.0
        %206 = vst.msk [vmem:[%s161 + $0xd9] sm:$0x1] %vm162, 0.0
        %207 = vst.msk [vmem:[%s161 + $0xe9] sm:$0x1] %vm162, 0.0
        %208 = vst.msk [vmem:[%s161 + $0xf9] sm:$0x1] %vm162, 0.0
        %209 = vst.msk [vmem:[%s161 + $0x109] sm:$0x1] %vm162, 0.0
        %210 = vst.msk [vmem:[%s161 + $0x119] sm:$0x1] %vm162, 0.0
        %211 = vst.msk [vmem:[%s161 + $0x149] sm:$0x1] %vm162, 0.0
        %212 = vst.msk [vmem:[%s161 + $0x159] sm:$0x1] %vm162, 0.0
        %213 = vst.msk [vmem:[%s161 + $0x169] sm:$0x1] %vm162, 0.0
        %214 = vst.msk [vmem:[%s161 + $0x179] sm:$0x1] %vm162, 0.0
        %215 = vst.msk [vmem:[%s161 + $0x189] sm:$0x1] %vm162, 0.0
        %216 = vst.msk [vmem:[%s161 + $0x199] sm:$0x1] %vm162, 0.0
        %217 = vst.msk [vmem:[%s161 + $0x1a9] sm:$0x1] %vm162, 0.0
        %218 = vst.msk [vmem:[%s161 + $0x1b9] sm:$0x1] %vm162, 0.0
        %219 = vst.msk [vmem:[%s161 + $0x1e9] sm:$0x1] %vm162, 0.0
        %220 = vst.msk [vmem:[%s161 + $0x1f9] sm:$0x1] %vm162, 0.0
        %221 = vst.msk [vmem:[%s161 + $0x209] sm:$0x1] %vm162, 0.0
        %222 = vst.msk [vmem:[%s161 + $0x219] sm:$0x1] %vm162, 0.0
        %223 = vst.msk [vmem:[%s161 + $0x229] sm:$0x1] %vm162, 0.0
        %224 = vst.msk [vmem:[%s161 + $0x239] sm:$0x1] %vm162, 0.0
        %225 = vst.msk [vmem:[%s161 + $0x249] sm:$0x1] %vm162, 0.0
        %226 = vst.msk [vmem:[%s161 + $0x259] sm:$0x1] %vm162, 0.0
        %vm227 = vcmask 7168
        %228 = vst.msk [vmem:[%s161 + $0x1] sm:$0xff] %vm227, 0.0
        %229 = vst.msk [vmem:[%s161 + $0x11] sm:$0xff] %vm227, 0.0
        %230 = vst.msk [vmem:[%s161 + $0x21] sm:$0xff] %vm227, 0.0
        %231 = vst.msk [vmem:[%s161 + $0x31] sm:$0xff] %vm227, 0.0
        %232 = vst.msk [vmem:[%s161 + $0x41] sm:$0xff] %vm227, 0.0
        %233 = vst.msk [vmem:[%s161 + $0x51] sm:$0xff] %vm227, 0.0
        %234 = vst.msk [vmem:[%s161 + $0x61] sm:$0xff] %vm227, 0.0
        %235 = vst.msk [vmem:[%s161 + $0x71] sm:$0xff] %vm227, 0.0
        %236 = vst.msk [vmem:[%s161 + $0xa1] sm:$0xff] %vm227, 0.0
        %237 = vst.msk [vmem:[%s161 + $0xb1] sm:$0xff] %vm227, 0.0
        %238 = vst.msk [vmem:[%s161 + $0xc1] sm:$0xff] %vm227, 0.0
        %239 = vst.msk [vmem:[%s161 + $0xd1] sm:$0xff] %vm227, 0.0
        %240 = vst.msk [vmem:[%s161 + $0xe1] sm:$0xff] %vm227, 0.0
        %241 = vst.msk [vmem:[%s161 + $0xf1] sm:$0xff] %vm227, 0.0
        %242 = vst.msk [vmem:[%s161 + $0x101] sm:$0xff] %vm227, 0.0
        %243 = vst.msk [vmem:[%s161 + $0x111] sm:$0xff] %vm227, 0.0
        %244 = vst.msk [vmem:[%s161 + $0x141] sm:$0xff] %vm227, 0.0
        %245 = vst.msk [vmem:[%s161 + $0x151] sm:$0xff] %vm227, 0.0
        %246 = vst.msk [vmem:[%s161 + $0x161] sm:$0xff] %vm227, 0.0
        %247 = vst.msk [vmem:[%s161 + $0x171] sm:$0xff] %vm227, 0.0
        %248 = vst.msk [vmem:[%s161 + $0x181] sm:$0xff] %vm227, 0.0
        %249 = vst.msk [vmem:[%s161 + $0x191] sm:$0xff] %vm227, 0.0
        %250 = vst.msk [vmem:[%s161 + $0x1a1] sm:$0xff] %vm227, 0.0
        %251 = vst.msk [vmem:[%s161 + $0x1b1] sm:$0xff] %vm227, 0.0
        %252 = vst.msk [vmem:[%s161 + $0x1e1] sm:$0xff] %vm227, 0.0
        %253 = vst.msk [vmem:[%s161 + $0x1f1] sm:$0xff] %vm227, 0.0
        %254 = vst.msk [vmem:[%s161 + $0x201] sm:$0xff] %vm227, 0.0
        %255 = vst.msk [vmem:[%s161 + $0x211] sm:$0xff] %vm227, 0.0
        %256 = vst.msk [vmem:[%s161 + $0x221] sm:$0xff] %vm227, 0.0
        %257 = vst.msk [vmem:[%s161 + $0x231] sm:$0xff] %vm227, 0.0
        %258 = vst.msk [vmem:[%s161 + $0x241] sm:$0xff] %vm227, 0.0
        %259 = vst.msk [vmem:[%s161 + $0x251] sm:$0xff] %vm227, 0.0
        %vm260 = vcmask 80968
        %261 = vst.msk [vmem:[%s161 + $0x1] sm:$0xff] %vm260, 0.0
        %262 = vst.msk [vmem:[%s161 + $0x11] sm:$0xff] %vm260, 0.0
        %263 = vst.msk [vmem:[%s161 + $0x21] sm:$0xff] %vm260, 0.0
        %264 = vst.msk [vmem:[%s161 + $0x31] sm:$0xff] %vm260, 0.0
        %265 = vst.msk [vmem:[%s161 + $0x41] sm:$0xff] %vm260, 0.0
        %266 = vst.msk [vmem:[%s161 + $0x51] sm:$0xff] %vm260, 0.0
        %267 = vst.msk [vmem:[%s161 + $0x61] sm:$0xff] %vm260, 0.0
        %268 = vst.msk [vmem:[%s161 + $0x71] sm:$0xff] %vm260, 0.0
        %269 = vst.msk [vmem:[%s161 + $0xa1] sm:$0xff] %vm260, 0.0
        %270 = vst.msk [vmem:[%s161 + $0xb1] sm:$0xff] %vm260, 0.0
        %271 = vst.msk [vmem:[%s161 + $0xc1] sm:$0xff] %vm260, 0.0
        %272 = vst.msk [vmem:[%s161 + $0xd1] sm:$0xff] %vm260, 0.0
        %273 = vst.msk [vmem:[%s161 + $0xe1] sm:$0xff] %vm260, 0.0
        %274 = vst.msk [vmem:[%s161 + $0xf1] sm:$0xff] %vm260, 0.0
        %275 = vst.msk [vmem:[%s161 + $0x101] sm:$0xff] %vm260, 0.0
        %276 = vst.msk [vmem:[%s161 + $0x111] sm:$0xff] %vm260, 0.0
        %277 = vst.msk [vmem:[%s161 + $0x141] sm:$0xff] %vm260, 0.0
        %278 = vst.msk [vmem:[%s161 + $0x151] sm:$0xff] %vm260, 0.0
        %279 = vst.msk [vmem:[%s161 + $0x161] sm:$0xff] %vm260, 0.0
        %280 = vst.msk [vmem:[%s161 + $0x171] sm:$0xff] %vm260, 0.0
        %281 = vst.msk [vmem:[%s161 + $0x181] sm:$0xff] %vm260, 0.0
        %282 = vst.msk [vmem:[%s161 + $0x191] sm:$0xff] %vm260, 0.0
        %283 = vst.msk [vmem:[%s161 + $0x1a1] sm:$0xff] %vm260, 0.0
        %284 = vst.msk [vmem:[%s161 + $0x1b1] sm:$0xff] %vm260, 0.0
        %285 = vst.msk [vmem:[%s161 + $0x1e1] sm:$0xff] %vm260, 0.0
        %286 = vst.msk [vmem:[%s161 + $0x1f1] sm:$0xff] %vm260, 0.0
        %287 = vst.msk [vmem:[%s161 + $0x201] sm:$0xff] %vm260, 0.0
        %288 = vst.msk [vmem:[%s161 + $0x211] sm:$0xff] %vm260, 0.0
        %289 = vst.msk [vmem:[%s161 + $0x221] sm:$0xff] %vm260, 0.0
        %290 = vst.msk [vmem:[%s161 + $0x231] sm:$0xff] %vm260, 0.0
        %291 = vst.msk [vmem:[%s161 + $0x241] sm:$0xff] %vm260, 0.0
        %292 = vst.msk [vmem:[%s161 + $0x251] sm:$0xff] %vm260, 0.0
        %v293 = vld [vmem:[%s114] sm:$0xff]
        %v294 = vld [vmem:[%s114 + $0x8] sm:$0xff]
        %v295 = vld [vmem:[%s114 + $0x10] sm:$0xff]
        %v296 = vld [vmem:[%s114 + $0x18] sm:$0xff]
        %v297 = vld [vmem:[%s114 + $0x20] sm:$0xff]
        %v298 = vld [vmem:[%s114 + $0x28] sm:$0xff]
        %v299 = vld [vmem:[%s114 + $0x30] sm:$0xff]
        %v300 = vld [vmem:[%s114 + $0x38] sm:$0xff]
        %v301 = vld [vmem:[%s114 + $0x40] sm:$0xff]
        %v302 = vld [vmem:[%s114 + $0x48] sm:$0xff]
        %v303 = vld [vmem:[%s114 + $0x50] sm:$0xff]
        %v304 = vld [vmem:[%s114 + $0x58] sm:$0xff]
        %v305 = vld [vmem:[%s114 + $0x60] sm:$0xff]
        %v306 = vld [vmem:[%s114 + $0x68] sm:$0xff]
        %v307 = vld [vmem:[%s114 + $0x70] sm:$0xff]
        %v308 = vld [vmem:[%s114 + $0x78] sm:$0xff]
        %v309 = vld [vmem:[%s114 + $0x80] sm:$0xff]
        %v310 = vld [vmem:[%s114 + $0x88] sm:$0xff]
        %v311 = vld [vmem:[%s114 + $0x90] sm:$0xff]
        %v312 = vld [vmem:[%s114 + $0x98] sm:$0xff]
        %v313 = vld [vmem:[%s114 + $0xa0] sm:$0xff]
        %v314 = vld [vmem:[%s114 + $0xa8] sm:$0xff]
        %v315 = vld [vmem:[%s114 + $0xb0] sm:$0xff]
        %v316 = vld [vmem:[%s114 + $0xb8] sm:$0xff]
        %v317 = vld [vmem:[%s114 + $0xc0] sm:$0xff]
        %v318 = vld [vmem:[%s114 + $0xc8] sm:$0xff]
        %v319 = vld [vmem:[%s114 + $0xd0] sm:$0xff]
        %v320 = vld [vmem:[%s114 + $0xd8] sm:$0xff]
        %v321 = vld [vmem:[%s114 + $0xe0] sm:$0xff]
        %v322 = vld [vmem:[%s114 + $0xe8] sm:$0xff]
        %v323 = vld [vmem:[%s114 + $0xf0] sm:$0xff]
        %v324 = vld [vmem:[%s114 + $0xf8] sm:$0xff]
        %357 = vrot.lane.b32.xlu0 %v293, 1
        %v358 = vpop.permute.xlu0 %357
        %359 = vrot.lane.b32.xlu0 %v294, 1
        %v360 = vpop.permute.xlu0 %359
        %361 = vrot.lane.b32.xlu0 %v295, 1
        %v362 = vpop.permute.xlu0 %361
        %363 = vrot.lane.b32.xlu0 %v296, 1
        %v364 = vpop.permute.xlu0 %363
        %365 = vrot.lane.b32.xlu0 %v297, 1
        %v366 = vpop.permute.xlu0 %365
        %367 = vrot.lane.b32.xlu0 %v298, 1
        %v368 = vpop.permute.xlu0 %367
        %369 = vrot.lane.b32.xlu0 %v299, 1
        %v370 = vpop.permute.xlu0 %369
        %371 = vrot.lane.b32.xlu0 %v300, 1
        %v372 = vpop.permute.xlu0 %371
        %373 = vrot.lane.b32.xlu0 %v301, 1
        %v374 = vpop.permute.xlu0 %373
        %375 = vrot.lane.b32.xlu0 %v302, 1
        %v376 = vpop.permute.xlu0 %375
        %377 = vrot.lane.b32.xlu0 %v303, 1
        %v378 = vpop.permute.xlu0 %377
        %379 = vrot.lane.b32.xlu0 %v304, 1
        %v380 = vpop.permute.xlu0 %379
        %381 = vrot.lane.b32.xlu0 %v305, 1
        %v382 = vpop.permute.xlu0 %381
        %383 = vrot.lane.b32.xlu0 %v306, 1
        %v384 = vpop.permute.xlu0 %383
        %385 = vrot.lane.b32.xlu0 %v307, 1
        %v386 = vpop.permute.xlu0 %385
        %387 = vrot.lane.b32.xlu0 %v308, 1
        %v388 = vpop.permute.xlu0 %387
        %389 = vrot.lane.b32.xlu0 %v309, 1
        %v390 = vpop.permute.xlu0 %389
        %391 = vrot.lane.b32.xlu0 %v310, 1
        %v392 = vpop.permute.xlu0 %391
        %393 = vrot.lane.b32.xlu0 %v311, 1
        %v394 = vpop.permute.xlu0 %393
        %395 = vrot.lane.b32.xlu0 %v312, 1
        %v396 = vpop.permute.xlu0 %395
        %397 = vrot.lane.b32.xlu0 %v313, 1
        %v398 = vpop.permute.xlu0 %397
        %399 = vrot.lane.b32.xlu0 %v314, 1
        %v400 = vpop.permute.xlu0 %399
        %401 = vrot.lane.b32.xlu0 %v315, 1
        %v402 = vpop.permute.xlu0 %401
        %403 = vrot.lane.b32.xlu0 %v316, 1
        %v404 = vpop.permute.xlu0 %403
        %405 = vrot.lane.b32.xlu0 %v317, 1
        %v406 = vpop.permute.xlu0 %405
        %407 = vrot.lane.b32.xlu0 %v318, 1
        %v408 = vpop.permute.xlu0 %407
        %409 = vrot.lane.b32.xlu0 %v319, 1
        %v410 = vpop.permute.xlu0 %409
        %411 = vrot.lane.b32.xlu0 %v320, 1
        %v412 = vpop.permute.xlu0 %411
        %413 = vrot.lane.b32.xlu0 %v321, 1
        %v414 = vpop.permute.xlu0 %413
        %415 = vrot.lane.b32.xlu0 %v322, 1
        %v416 = vpop.permute.xlu0 %415
        %417 = vrot.lane.b32.xlu0 %v323, 1
        %v418 = vpop.permute.xlu0 %417
        %419 = vrot.lane.b32.xlu0 %v324, 1
        %v420 = vpop.permute.xlu0 %419
        %vm453 = vcmask 72712
        %454 = vst.msk [vmem:[%s161 + $0x1] sm:$0xff] %vm453, %v358
        %455 = vst.msk [vmem:[%s161 + $0x11] sm:$0xff] %vm453, %v360
        %456 = vst.msk [vmem:[%s161 + $0x21] sm:$0xff] %vm453, %v362
        %457 = vst.msk [vmem:[%s161 + $0x31] sm:$0xff] %vm453, %v364
        %458 = vst.msk [vmem:[%s161 + $0x41] sm:$0xff] %vm453, %v366
        %459 = vst.msk [vmem:[%s161 + $0x51] sm:$0xff] %vm453, %v368
        %460 = vst.msk [vmem:[%s161 + $0x61] sm:$0xff] %vm453, %v370
        %461 = vst.msk [vmem:[%s161 + $0x71] sm:$0xff] %vm453, %v372
        %462 = vst.msk [vmem:[%s161 + $0xa1] sm:$0xff] %vm453, %v374
        %463 = vst.msk [vmem:[%s161 + $0xb1] sm:$0xff] %vm453, %v376
        %464 = vst.msk [vmem:[%s161 + $0xc1] sm:$0xff] %vm453, %v378
        %465 = vst.msk [vmem:[%s161 + $0xd1] sm:$0xff] %vm453, %v380
        %466 = vst.msk [vmem:[%s161 + $0xe1] sm:$0xff] %vm453, %v382
        %467 = vst.msk [vmem:[%s161 + $0xf1] sm:$0xff] %vm453, %v384
        %468 = vst.msk [vmem:[%s161 + $0x101] sm:$0xff] %vm453, %v386
        %469 = vst.msk [vmem:[%s161 + $0x111] sm:$0xff] %vm453, %v388
        %470 = vst.msk [vmem:[%s161 + $0x141] sm:$0xff] %vm453, %v390
        %471 = vst.msk [vmem:[%s161 + $0x151] sm:$0xff] %vm453, %v392
        %472 = vst.msk [vmem:[%s161 + $0x161] sm:$0xff] %vm453, %v394
        %473 = vst.msk [vmem:[%s161 + $0x171] sm:$0xff] %vm453, %v396
        %474 = vst.msk [vmem:[%s161 + $0x181] sm:$0xff] %vm453, %v398
        %475 = vst.msk [vmem:[%s161 + $0x191] sm:$0xff] %vm453, %v400
        %476 = vst.msk [vmem:[%s161 + $0x1a1] sm:$0xff] %vm453, %v402
        %477 = vst.msk [vmem:[%s161 + $0x1b1] sm:$0xff] %vm453, %v404
        %478 = vst.msk [vmem:[%s161 + $0x1e1] sm:$0xff] %vm453, %v406
        %479 = vst.msk [vmem:[%s161 + $0x1f1] sm:$0xff] %vm453, %v408
        %480 = vst.msk [vmem:[%s161 + $0x201] sm:$0xff] %vm453, %v410
        %481 = vst.msk [vmem:[%s161 + $0x211] sm:$0xff] %vm453, %v412
        %482 = vst.msk [vmem:[%s161 + $0x221] sm:$0xff] %vm453, %v414
        %483 = vst.msk [vmem:[%s161 + $0x231] sm:$0xff] %vm453, %v416
        %484 = vst.msk [vmem:[%s161 + $0x241] sm:$0xff] %vm453, %v418
        %485 = vst.msk [vmem:[%s161 + $0x251] sm:$0xff] %vm453, %v420
        %s486 = smul.u32 4, %s15
        %p487 = scmp.lt.s32.totalorder %s486, 7
        %s488 = scalar_select %p487, %s486, 7
        %s489 = smul.addr %s488, 20
        %s490 = smul.addr %s489, 8
        %s491 = scalar_lea.vmem %s1, %s490
        // Predicated region
        $region29: #{tpu_custom_call.1} parent=23 // pred_check
          %p492 = pneg %p59
        $region30: #{tpu_custom_call.1} parent=23 // pred_check_branch
          %494 = sbr.rel (%p492) target = $region32
        $region31: #{tpu_custom_call.1} parent=23 // pred_region
          %s495 = smul.u32 4, %s15
        $region32: #{tpu_custom_call.1} parent=23 // pred_fallthru
          _
      $region24: #{tpu_custom_call.1} parent=5 // pred_fallthru
        _
      %p496 = scmp.le.s32.totalorder 2, %s10
      // Predicated region
      $region33: #{tpu_custom_call.1} parent=5 // pred_check
        %p497 = pneg %p496
      $region34: #{tpu_custom_call.1} parent=5 // pred_check_branch
        %499 = sbr.rel (%p497) target = $region36
      $region35: #{tpu_custom_call.1} parent=5 // pred_region
        %s500 = ssub.s32 %s10, 2
        // Predicated region
        $region37: #{tpu_custom_call.1} parent=35 // pred_check
          %p501 = pneg %p65
        $region38: #{tpu_custom_call.1} parent=35 // pred_check_branch
          %503 = sbr.rel (%p501) target = $region40
        $region39: #{tpu_custom_call.1} parent=35 // pred_region
          %s504 = smul.u32 4, %s16
          %p505 = scmp.lt.s32.totalorder %s504, 7
          %s506 = scalar_select %p505, %s504, 7
          %s507 = smul.addr %s506, 20
          %s508 = smul.addr %s507, 8
          %s509 = scalar_lea.vmem %s1, %s508
        $region40: #{tpu_custom_call.1} parent=35 // pred_fallthru
          _
      $region36: #{tpu_custom_call.1} parent=5 // pred_fallthru
        _
    $region6: #{tpu_custom_call.1} parent=1 // loop_footer
      %s14 = sadd.s32 1, %s10
    $region7: #{tpu_custom_call.1} parent=1 // loop_footer_branch
      %9 = sbr.rel target = $region3
    $region8: #{tpu_custom_call.1} parent=1 // loop_exit
      _
    %510 = vsyncpa [#allocation3], 1
    %s511 = scalar_lea.sflag [#allocation3], 1
    %512 = vsyncpa %s511, 1

</llo_original>
